<compile_context>
chip_gen: v5e
topology: v5e:2x2
jax: 0.10.0
libtpu: 0.0.40
codegen_flags: <defaults>
</compile_context>

<pallas_src>
import functools

import jax
import jax.numpy as jnp
from jax.experimental import pallas as pl
from jax.experimental.pallas import tpu as pltpu


def mlp_kernel(x_ref, w1_ref, b1_ref, w2_ref, b2_ref, o_ref):
    # Cast x in-VMEM (free on the VPU) instead of materializing a bf16 copy in HBM.
    x = x_ref[...].astype(w1_ref.dtype)
    # fc1: (tb, D_in) @ (D_in, H) on the MXU, bf16 in / f32 accumulate.
    h = jnp.dot(x, w1_ref[...], preferred_element_type=jnp.float32)
    # bias + ReLU in f32 (VPU epilogue).
    h = jnp.maximum(h + b1_ref[...], 0.0)
    # TODO(synk): Dropout(p=0.1) is identity in eval mode; train-mode masking
    # would be applied here in-kernel via pltpu.prng_seed + pltpu.prng_random_bits
    # with a 1/(1-p) scale (no separate XLA dropout pass).
    # fc2: (tb, H) @ (H, D_out); cast intermediate back to the MXU dtype.
    h = h.astype(w2_ref.dtype)
    out = jnp.dot(h, w2_ref[...], preferred_element_type=jnp.float32)
    out = jnp.maximum(out + b2_ref[...], 0.0)
    o_ref[...] = out.astype(o_ref.dtype)


def _round_up(n, m):
    return ((n + m - 1) // m) * m


def prepare_params(w1, b1, w2, b2, compute_dtype=jnp.bfloat16):
    """One-time parameter prep (hoisted out of the per-call forward).

    Casts weights to the MXU dtype and reshapes biases to f32 row vectors.
    Weights are stored already transposed vs. PyTorch's (out, in): (in, out).
    """
    w1p = w1.astype(compute_dtype)
    b1p = b1.astype(jnp.float32).reshape(1, -1)
    w2p = w2.astype(compute_dtype)
    b2p = b2.astype(jnp.float32).reshape(1, -1)
    return w1p, b1p, w2p, b2p


@functools.partial(jax.jit, static_argnames=("tb",))
def simple_net_forward(x, w1, b1, w2, b2, *, tb=512):
    """Fused SimpleNet forward.

    x:  (B, D_in)        activations (any float dtype; cast to bf16 in-kernel)
    w1: (D_in, H) bf16   fc1 weight (from prepare_params)
    b1: (1, H)   f32
    w2: (H, D_out) bf16  fc2 weight
    b2: (1, D_out) f32
    """
    B, D_in = x.shape
    H = w1.shape[1]
    D_out = w2.shape[1]
    out_dtype = x.dtype

    # Batch tile: big enough to fill the MXU / amortize per-step overhead,
    # clamped for tiny batches; multiple of 8 satisfies the sublane rule.
    tb = min(tb, _round_up(B, 8))
    grid = (pl.cdiv(B, tb),)  # ragged last tile is masked by Pallas on write

    flops = 2 * B * (D_in * H + H * D_out)
    bytes_accessed = (
        x.size * x.dtype.itemsize
        + w1.size * w1.dtype.itemsize
        + b1.size * b1.dtype.itemsize
        + w2.size * w2.dtype.itemsize
        + b2.size * b2.dtype.itemsize
        + B * D_out * jnp.dtype(out_dtype).itemsize
    )

    return pl.pallas_call(
        mlp_kernel,
        out_shape=jax.ShapeDtypeStruct((B, D_out), out_dtype),
        grid=grid,
        in_specs=[
            pl.BlockSpec((tb, D_in), lambda i: (i, 0)),   # x tile marches over batch
            pl.BlockSpec((D_in, H), lambda i: (0, 0)),    # w1 resident in VMEM
            pl.BlockSpec((1, H), lambda i: (0, 0)),       # b1 resident
            pl.BlockSpec((H, D_out), lambda i: (0, 0)),   # w2 resident
            pl.BlockSpec((1, D_out), lambda i: (0, 0)),   # b2 resident
        ],
        out_specs=pl.BlockSpec((tb, D_out), lambda i: (i, 0)),
        compiler_params=pltpu.CompilerParams(
            # "parallel" lets the batch tiles shard across TensorCores where
            # supported (swap to pltpu.CORE_PARALLEL when targeting v7x only).
            dimension_semantics=("parallel",),
        ),
        cost_estimate=pl.CostEstimate(
            flops=flops, transcendentals=0, bytes_accessed=bytes_accessed),
    )(x, w1, b1, w2, b2)


def init_params(key, input_dim, hidden_dim, output_dim, dtype=jnp.float32):
    """Deterministic init mimicking nn.Linear's uniform(-1/sqrt(fan_in), ...)."""
    k1, k2, k3, k4 = jax.random.split(key, 4)
    bound1 = 1.0 / (input_dim ** 0.5)
    bound2 = 1.0 / (hidden_dim ** 0.5)
    # weights stored already transposed: (in, out)
    w1 = jax.random.uniform(k1, (input_dim, hidden_dim), dtype, -bound1, bound1)
    b1 = jax.random.uniform(k2, (hidden_dim,), dtype, -bound1, bound1)
    w2 = jax.random.uniform(k3, (hidden_dim, output_dim), dtype, -bound2, bound2)
    b2 = jax.random.uniform(k4, (output_dim,), dtype, -bound2, bound2)
    return w1, b1, w2, b2


if __name__ == "__main__":
    input_dim, hidden_dim, output_dim = 32, 64, 16
    batch = 8

    key = jax.random.PRNGKey(0)
    kx, kp = jax.random.split(key)
    x = jax.random.normal(kx, (batch, input_dim), dtype=jnp.float32)
    w1, b1, w2, b2 = init_params(kp, input_dim, hidden_dim, output_dim)

    # One-time param prep (cast/reshape) — NOT part of the per-call forward.
    w1p, b1p, w2p, b2p = prepare_params(w1, b1, w2, b2)

    out = simple_net_forward(x, w1p, b1p, w2p, b2p)
    out = jax.block_until_ready(out)

    # Pure-JAX f32 reference (dropout in eval mode == identity).
    ref_f32 = jnp.maximum(jnp.maximum(x @ w1 + b1, 0.0) @ w2 + b2, 0.0)
    assert out.shape == (batch, output_dim)
    # Kernel runs the matmuls in bf16 with f32 accumulation -> loosen tolerance.
    assert jnp.allclose(out, ref_f32, atol=2e-2, rtol=2e-2), (
        float(jnp.max(jnp.abs(out - ref_f32))))

    print("KERNEL_OK")
</pallas_src>

<mosaic_0001>
module attributes {stable_mosaic.version = 11 : i64} {
  func.func @mlp_kernel(%arg0: i32, %arg1: memref<8x32xf32, #tpu.memory_space<vmem>>, %arg2: memref<32x64xbf16, #tpu.memory_space<vmem>>, %arg3: memref<1x64xf32, #tpu.memory_space<vmem>>, %arg4: memref<64x16xbf16, #tpu.memory_space<vmem>>, %arg5: memref<1x16xf32, #tpu.memory_space<vmem>>, %arg6: memref<8x16xf32, #tpu.memory_space<vmem>>) attributes {dimension_semantics = [#tpu.dimension_semantics<parallel>], iteration_bounds = array<i64: 1>, scalar_prefetch = 0 : i64, scratch_operands = 0 : i64, tpu.core_type = #tpu.core_type<tc>, window_params = [{transform_indices = @transform_0, window_bounds = array<i64: 8, 32>}, {pipeline_mode = #tpu.pipeline_mode<synchronous>, transform_indices = @transform_1, window_bounds = array<i64: 32, 64>}, {pipeline_mode = #tpu.pipeline_mode<synchronous>, transform_indices = @transform_2, window_bounds = array<i64: 1, 64>}, {pipeline_mode = #tpu.pipeline_mode<synchronous>, transform_indices = @transform_3, window_bounds = array<i64: 64, 16>}, {pipeline_mode = #tpu.pipeline_mode<synchronous>, transform_indices = @transform_4, window_bounds = array<i64: 1, 16>}, {transform_indices = @transform_5, window_bounds = array<i64: 8, 16>}]} {
    %c0 = arith.constant 0 : index
    %c0_0 = arith.constant 0 : index
    %0 = vector.load %arg1[%c0, %c0_0] : memref<8x32xf32, #tpu.memory_space<vmem>>, vector<8x32xf32>
    %1 = arith.truncf %0 : vector<8x32xf32> to vector<8x32xbf16>
    %c0_1 = arith.constant 0 : index
    %c0_2 = arith.constant 0 : index
    %2 = vector.load %arg2[%c0_1, %c0_2] : memref<32x64xbf16, #tpu.memory_space<vmem>>, vector<32x64xbf16>
    %cst = arith.constant dense<0.000000e+00> : vector<8x64xf32>
    %3 = tpu.matmul %1, %2, %cst {dimension_numbers = #tpu.dot_dimension_numbers<[1], [0], [0], [1], [0, 0, 1, 1], [], []>} : vector<8x32xbf16>, vector<32x64xbf16>, vector<8x64xf32> -> vector<8x64xf32>
    %c0_3 = arith.constant 0 : index
    %c0_4 = arith.constant 0 : index
    %4 = vector.load %arg3[%c0_3, %c0_4] : memref<1x64xf32, #tpu.memory_space<vmem>>, vector<1x64xf32>
    %5 = vector.broadcast %4 : vector<1x64xf32> to vector<8x64xf32>
    %6 = arith.addf %3, %5 : vector<8x64xf32>
    %cst_5 = arith.constant 0.000000e+00 : f32
    %7 = vector.broadcast %cst_5 : f32 to vector<8x64xf32>
    %8 = arith.maximumf %6, %7 : vector<8x64xf32>
    %9 = arith.truncf %8 : vector<8x64xf32> to vector<8x64xbf16>
    %c0_6 = arith.constant 0 : index
    %c0_7 = arith.constant 0 : index
    %10 = vector.load %arg4[%c0_6, %c0_7] : memref<64x16xbf16, #tpu.memory_space<vmem>>, vector<64x16xbf16>
    %cst_8 = arith.constant dense<0.000000e+00> : vector<8x16xf32>
    %11 = tpu.matmul %9, %10, %cst_8 {dimension_numbers = #tpu.dot_dimension_numbers<[1], [0], [0], [1], [0, 0, 1, 1], [], []>} : vector<8x64xbf16>, vector<64x16xbf16>, vector<8x16xf32> -> vector<8x16xf32>
    %c0_9 = arith.constant 0 : index
    %c0_10 = arith.constant 0 : index
    %12 = vector.load %arg5[%c0_9, %c0_10] : memref<1x16xf32, #tpu.memory_space<vmem>>, vector<1x16xf32>
    %13 = vector.broadcast %12 : vector<1x16xf32> to vector<8x16xf32>
    %14 = arith.addf %11, %13 : vector<8x16xf32>
    %cst_11 = arith.constant 0.000000e+00 : f32
    %15 = vector.broadcast %cst_11 : f32 to vector<8x16xf32>
    %16 = arith.maximumf %14, %15 : vector<8x16xf32>
    %c0_12 = arith.constant 0 : index
    %c0_13 = arith.constant 0 : index
    %17 = vector.load %arg6[%c0_12, %c0_13] : memref<8x16xf32, #tpu.memory_space<vmem>>, vector<8x16xf32>
    tpu.vector_store %arg6[%c0_12, %c0_13], %16 {strides = array<i32>} : memref<8x16xf32, #tpu.memory_space<vmem>>, vector<8x16xf32>,
    return
  }
  func.func @transform_0(%arg0: i32) -> (i32, i32) {
    %c0_i32 = arith.constant 0 : i32
    %c0_i32_0 = arith.constant 0 : i32
    return %arg0, %c0_i32 : i32, i32
  }
  func.func @transform_1(%arg0: i32) -> (i32, i32) {
    %c0_i32 = arith.constant 0 : i32
    %c0_i32_0 = arith.constant 0 : i32
    %c0_i32_1 = arith.constant 0 : i32
    return %c0_i32, %c0_i32_0 : i32, i32
  }
  func.func @transform_2(%arg0: i32) -> (i32, i32) {
    %c0_i32 = arith.constant 0 : i32
    %c0_i32_0 = arith.constant 0 : i32
    %c0_i32_1 = arith.constant 0 : i32
    return %c0_i32, %c0_i32_0 : i32, i32
  }
  func.func @transform_3(%arg0: i32) -> (i32, i32) {
    %c0_i32 = arith.constant 0 : i32
    %c0_i32_0 = arith.constant 0 : i32
    %c0_i32_1 = arith.constant 0 : i32
    return %c0_i32, %c0_i32_0 : i32, i32
  }
  func.func @transform_4(%arg0: i32) -> (i32, i32) {
    %c0_i32 = arith.constant 0 : i32
    %c0_i32_0 = arith.constant 0 : i32
    %c0_i32_1 = arith.constant 0 : i32
    return %c0_i32, %c0_i32_0 : i32, i32
  }
  func.func @transform_5(%arg0: i32) -> (i32, i32) {
    %c0_i32 = arith.constant 0 : i32
    %c0_i32_0 = arith.constant 0 : i32
    return %arg0, %c0_i32 : i32, i32
  }
}

</mosaic_0001>

<llo_original>
// kernel: simple_net_forward.1
$region0: #{simple_net_forward.1}
  #allocation0 [shape = 'u32[]', space=smem, size = 0x4, offset = 0x4, fixed_abs, tag = 'smem constant byte address 0x4 - core index']
  #allocation1 [shape = 'u32[72,128]{1,0:T(1,128)}', space=vmem, size = 0x9000, scoped, tag = 'internal scratch']
  %s0 = inlined_call_operand.vmem [shape: f32[8,32], index: 0, kind: input, shape index: {}]
  %s1 = inlined_call_operand.vmem [shape: bf16[32,64], index: 1, kind: input, shape index: {}]
  %s2 = inlined_call_operand.vmem [shape: f32[1,64], index: 2, kind: input, shape index: {}]
  %s3 = inlined_call_operand.vmem [shape: bf16[64,16], index: 3, kind: input, shape index: {}]
  %s4 = inlined_call_operand.vmem [shape: f32[1,16], index: 4, kind: input, shape index: {}]
  %s5 = inlined_call_operand.hbm [shape: f32[8,16], index: 5, kind: output, shape index: {}]
  %s6 = sld [smem:[#allocation0]]
  $region30: #{simple_net_forward.1} parent=0
    _
  %s8 = ssub.s32 1, %s6
  %s9 = scalar_select 0, %s8, %s6
  $region1: #{simple_net_forward.1} parent=0
    #allocation2 [shape = 'u8[4096]{0}', space=vmem, size = 0x1000, scoped, tag = 'output window, operand 0, single buffered']
    #allocation3 [shape = 's32[1]{0}', space=sflag, size = 0x4, scoped, tag = 'scoped memory for simple_net_forward.1']
    %10 = vsyncpa [#allocation3], 0
    // Predicated region
    $region2: #{simple_net_forward.1} parent=1 // pred_check
      _
    $region3: #{simple_net_forward.1} parent=1 // pred_check_branch
      %12 = sbr.rel (0) target = $region5
    $region4: #{simple_net_forward.1} parent=1 // pred_region
      _
    $region5: #{simple_net_forward.1} parent=1 // pred_fallthru
      _
    // Predicated region
    $region6: #{simple_net_forward.1} parent=1 // pred_check
      _
    $region7: #{simple_net_forward.1} parent=1 // pred_check_branch
      %14 = sbr.rel (0) target = $region9
    $region8: #{simple_net_forward.1} parent=1 // pred_region
      _
    $region9: #{simple_net_forward.1} parent=1 // pred_fallthru
      _
    // Predicated region
    $region10: #{simple_net_forward.1} parent=1 // pred_check
      _
    $region11: #{simple_net_forward.1} parent=1 // pred_check_branch
      %16 = sbr.rel (0) target = $region13
    $region12: #{simple_net_forward.1} parent=1 // pred_region
      _
    $region13: #{simple_net_forward.1} parent=1 // pred_fallthru
      _
    // Predicated region
    $region14: #{simple_net_forward.1} parent=1 // pred_check
      _
    $region15: #{simple_net_forward.1} parent=1 // pred_check_branch
      %18 = sbr.rel (0) target = $region17
    $region16: #{simple_net_forward.1} parent=1 // pred_region
      _
    $region17: #{simple_net_forward.1} parent=1 // pred_fallthru
      _
    // Predicated region
    $region18: #{simple_net_forward.1} parent=1 // pred_check
      _
    $region19: #{simple_net_forward.1} parent=1 // pred_check_branch
      %20 = sbr.rel (0) target = $region21
    $region20: #{simple_net_forward.1} parent=1 // pred_region
      _
    $region21: #{simple_net_forward.1} parent=1 // pred_fallthru
      _
    %v22 = vld [vmem:[%s0] sm:$0xff]
    %v23 = vpack.c.bf16 %v22, %v22
    %v24 = vld [vmem:[%s1] sm:$0xf]
    %v25 = vld [vmem:[%s1 + $0x4] sm:$0xf]
    %v26 = vld [vmem:[%s1 + $0x8] sm:$0xf]
    %v27 = vld [vmem:[%s1 + $0xc] sm:$0xf]
    %v28 = vld [vmem:[%s2] sm:$0x1]
    %v30 = vperm.slane %v28, 0
    %v36 = vunpack.c.l.b16 %v24
    %v37 = vunpack.c.l.b16 %v25
    %v38 = vunpack.c.l.b16 %v26
    %v39 = vunpack.c.l.b16 %v27
    %v40 = vpack.c.b16 %v37, %v36
    %v41 = vpack.c.b16 %v39, %v38
    %vm44 = vcmask 261120
    %v46 = vsel %vm44, %v23, 0
    %48 = vmatpush.bf16.msra.mxu0 0
    %49 = vmatpush.bf16.msra.mxu0 0
    %50 = vmatpush.bf16.msra.mxu0 0
    %51 = vmatpush.bf16.msra.mxu0 0
    %52 = vmatpush.bf16.msra.mxu0 0
    %53 = vmatpush.bf16.msra.mxu0 0
    %54 = vmatpush.bf16.msra.mxu0 %v41
    %55 = vmatpush.bf16.msra.mxu0 %v40
    %56 = vmatmul.bf16.gmra.mxu0 %v46
    %v57 = vpop.f32.mrf.mxu0
    %v58 = vadd.f32 %v30, %v57
    %v59 = vpop.f32.mrf.mxu0
    %60 = vdwg.mxu0
    %v61 = vmax.f32 %v58, 0.0
    %v62 = vpack.c.bf16 %v61, %v61
    %v63 = vld [vmem:[%s3] sm:$0xf]
    %v64 = vld [vmem:[%s3 + $0x4] sm:$0xf]
    %v65 = vld [vmem:[%s3 + $0x8] sm:$0xf]
    %v66 = vld [vmem:[%s3 + $0xc] sm:$0xf]
    %v67 = vld [vmem:[%s3 + $0x10] sm:$0xf]
    %v68 = vld [vmem:[%s3 + $0x14] sm:$0xf]
    %v69 = vld [vmem:[%s3 + $0x18] sm:$0xf]
    %v70 = vld [vmem:[%s3 + $0x1c] sm:$0xf]
    %v71 = vld [vmem:[%s4] sm:$0x1]
    %v73 = vperm.slane %v71, 0
    %v83 = vunpack.c.l.b16 %v63
    %v84 = vunpack.c.l.b16 %v64
    %v85 = vunpack.c.l.b16 %v65
    %v86 = vunpack.c.l.b16 %v66
    %v87 = vunpack.c.l.b16 %v67
    %v88 = vunpack.c.l.b16 %v68
    %v89 = vunpack.c.l.b16 %v69
    %v90 = vunpack.c.l.b16 %v70
    %v91 = vpack.c.b16 %v84, %v83
    %v92 = vpack.c.b16 %v86, %v85
    %v93 = vpack.c.b16 %v88, %v87
    %v94 = vpack.c.b16 %v90, %v89
    %vm99 = vcmask 523264
    %v101 = vsel %vm99, %v62, 0
    %103 = vmatpush.bf16.msra.mxu0 0
    %104 = vmatpush.bf16.msra.mxu0 0
    %105 = vmatpush.bf16.msra.mxu0 0
    %106 = vmatpush.bf16.msra.mxu0 0
    %107 = vmatpush.bf16.msra.mxu0 %v94
    %108 = vmatpush.bf16.msra.mxu0 %v93
    %109 = vmatpush.bf16.msra.mxu0 %v92
    %110 = vmatpush.bf16.msra.mxu0 %v91
    %111 = vmatmul.bf16.gmra.mxu0 %v101
    %v112 = vpop.f32.mrf.mxu0
    %v113 = vadd.f32 %v73, %v112
    %v114 = vpop.f32.mrf.mxu0
    %115 = vdwg.mxu0
    %v116 = vmax.f32 %v113, 0.0
    %vm117 = vcmask 130048
    %118 = vst.msk [vmem:[#allocation2] sm:$0xff] %vm117, %v116
    // Predicated region
    $region22: #{simple_net_forward.1} parent=1 // pred_check
      _
    $region23: #{simple_net_forward.1} parent=1 // pred_check_branch
      %120 = sbr.rel (0) target = $region25
    $region24: #{simple_net_forward.1} parent=1 // pred_region
      %122 = vsyncadd [#allocation3], 0
      %s124 = sshll.u32 [#allocation2], 4
      %s125 = int_to_ptr.vmem [resolvable:$true] %s124
      %s126 = sshll.u32 %s5, 4
      %s127 = int_to_ptr.hbm [resolvable:$true] %s126
      %129 = dma.vmem_to_hbm [thread:$0]  %s125, 128, %s127, [#allocation3]
    $region25: #{simple_net_forward.1} parent=1 // pred_fallthru
      _
    // Predicated region
    $region26: #{simple_net_forward.1} parent=1 // pred_check
      _
    $region27: #{simple_net_forward.1} parent=1 // pred_check_branch
      %131 = sbr.rel (0) target = $region29
    $region28: #{simple_net_forward.1} parent=1 // pred_region
      %133 = dma.done [#allocation3], 128
    $region29: #{simple_net_forward.1} parent=1 // pred_fallthru
      _
    %134 = vsyncpa [#allocation3], 1

</llo_original>
